<compile_context>
chip_gen: v7x
topology: tpu7x:2x2x1
jax: 0.10.0
libtpu: 0.0.40
codegen_flags: <defaults>
</compile_context>

<pallas_src>
import jax
import jax.numpy as jnp
from jax.experimental import pallas as pl
from jax.experimental.pallas import tpu as pltpu


# ---------------------------------------------------------------------------
# Kernels
# ---------------------------------------------------------------------------

def _attn_core(uh, h_ref, ww_ref, bias_ref, vw_ref, out_ref):
    """Shared body.  uh: (TF, A) f32 encoder projection for this tile's flat rows."""
    rows, sl = out_ref.shape          # output rows / seq-len handled by this tile
    tf = uh.shape[0]                  # flat rows in this tile (= rows * sl)
    b = h_ref.shape[0]                # batch size

    # wq = prev_h @ W^T + (W.bias + U.bias): bf16 MXU operands, f32 accumulation.
    wq = jnp.dot(h_ref[...], ww_ref[...],
                 preferred_element_type=jnp.float32) + bias_ref[...]       # (B, A)

    # Global flat row g = tile_offset + r maps to (sl = g // B, b = g % B).
    # Broadcast wq over the seq dim with an in-kernel one-hot (no HBM mask DMA).
    g = pl.program_id(0) * tf + jax.lax.broadcasted_iota(jnp.int32, (tf, b), 0)
    bcol = jax.lax.broadcasted_iota(jnp.int32, (tf, b), 1)
    sel_b = (g % b == bcol).astype(jnp.float32)                            # (TF, B)
    wq_full = jnp.dot(sel_b, wq, preferred_element_type=jnp.float32)       # (TF, A)

    wquh = jnp.tanh(uh + wq_full)                                          # (TF, A) f32
    # v(wquh): lane reduction over A.  v bias dropped (LogSoftmax shift-invariant).
    scores = jnp.sum(wquh * vw_ref[...], axis=-1, keepdims=True)           # (TF, 1)

    # Reproduce PyTorch's sl-major .view(B, SL):  out_local[p, j] = scores[p*SL + j].
    # Masks built from iota compares entirely in registers.
    r_sl = jax.lax.broadcasted_iota(jnp.int32, (tf, sl), 0)
    j_sl = jax.lax.broadcasted_iota(jnp.int32, (tf, sl), 1)
    right = (r_sl % sl == j_sl).astype(jnp.float32)                        # (TF, SL)
    p_row = jax.lax.broadcasted_iota(jnp.int32, (rows, tf), 0)
    r_row = jax.lax.broadcasted_iota(jnp.int32, (rows, tf), 1)
    left = ((r_row >= p_row * sl) &
            (r_row < (p_row + 1) * sl)).astype(jnp.float32)                # (ROWS, TF)
    s_bsl = jnp.dot(left, right * scores,
                    preferred_element_type=jnp.float32)                    # (ROWS, SL)

    # Fused, numerically stable LogSoftmax over dim=1 (f32).
    m = jnp.max(s_bsl, axis=-1, keepdims=True)
    z = s_bsl - m
    lse = jnp.log(jnp.sum(jnp.exp(z), axis=-1, keepdims=True))
    out_ref[...] = z - lse


def _attn_bahd_fused_kernel(x_ref, h_ref, uw_ref, ww_ref, bias_ref, vw_ref, out_ref):
    """Full forward: enc projection + attention scores + LogSoftmax, one call."""
    uh = jnp.dot(x_ref[...], uw_ref[...], preferred_element_type=jnp.float32)
    _attn_core(uh, h_ref, ww_ref, bias_ref, vw_ref, out_ref)


def _attn_bahd_step_kernel(uh_ref, h_ref, ww_ref, bias_ref, vw_ref, out_ref):
    """Decode-step variant consuming the cached bf16 encoder projection uh."""
    _attn_core(uh_ref[...].astype(jnp.float32), h_ref, ww_ref, bias_ref, vw_ref, out_ref)


def _precompute_uh_kernel(x_ref, uw_ref, out_ref):
    """uh = enc @ U, cached in bf16 (bias folded into the step kernel's wq bias)."""
    out_ref[...] = jnp.dot(x_ref[...], uw_ref[...],
                           preferred_element_type=jnp.float32).astype(out_ref.dtype)


# ---------------------------------------------------------------------------
# Wrappers
# ---------------------------------------------------------------------------

_VMEM_TILE_BUDGET = 8 * 1024 * 1024     # bytes for the double-buffered activation tile
_COMPILER_PARAMS = pltpu.CompilerParams(
    dimension_semantics=("parallel",),          # shards row-groups across v7x's 2 TCs
    vmem_limit_bytes=48 * 1024 * 1024,          # headroom on v7x's 64 MiB physical VMEM
)


def prepare_params(params):
    """One-time prep: PyTorch (out, in) Linear weights -> (in, out) in bf16 for the
    MXU; U and W biases folded together (f32); v bias dropped (shift-invariant)."""
    u_w, u_b, w_w, w_b, v_w, _v_b = params
    a_dim = u_w.shape[0]
    return {
        "uw_t": jnp.asarray(u_w.T, jnp.bfloat16),                       # (H, A)
        "ww_t": jnp.asarray(w_w.T, jnp.bfloat16),                       # (S, A)
        "bias": jnp.asarray((u_b + w_b).reshape(1, a_dim), jnp.float32),
        "vw":   jnp.asarray(v_w.reshape(1, a_dim), jnp.float32),
    }


def _rows_per_tile(b, sl, feat_bytes):
    """Output rows per grid step, sized for a ~8 MiB double-buffered activation
    tile (fits v7x's 64 MiB VMEM with headroom).  Must divide B; when the tile
    is smaller than the full array, keep ROWS*SL a multiple of 8 (sublane)."""
    per_row = 2 * sl * max(feat_bytes, 1)          # x2: input double buffering
    rows = max(1, min(b, _VMEM_TILE_BUDGET // per_row))
    while rows > 1 and (b % rows or (rows != b and (rows * sl) % 8)):
        rows -= 1
    return rows


def attn_bahd_forward(prev_h_batch, enc_outputs, prepared):
    """prev_h_batch: (1, B, S); enc_outputs: (SL, B, H) -> log attn weights (B, SL)."""
    sl, b, h_dim = enc_outputs.shape
    s_dim = prev_h_batch.shape[-1]
    a_dim = prepared["uw_t"].shape[1]
    # Contiguous reshapes + bf16 casts for the MXU (wrapper-side layout plumbing).
    x2d = enc_outputs.reshape(sl * b, h_dim).astype(jnp.bfloat16)
    h2d = prev_h_batch.reshape(b, s_dim).astype(jnp.bfloat16)

    rows = _rows_per_tile(b, sl, feat_bytes=2 * h_dim + 4 * a_dim)
    tf = rows * sl
    return pl.pallas_call(
        _attn_bahd_fused_kernel,
        out_shape=jax.ShapeDtypeStruct((b, sl), jnp.float32),
        grid=(b // rows,),
        in_specs=[
            pl.BlockSpec((tf, h_dim), lambda i: (i, 0)),       # activation tile
            pl.BlockSpec((b, s_dim), lambda i: (0, 0)),        # prev hidden (resident)
            pl.BlockSpec((h_dim, a_dim), lambda i: (0, 0)),    # U^T      (resident)
            pl.BlockSpec((s_dim, a_dim), lambda i: (0, 0)),    # W^T      (resident)
            pl.BlockSpec((1, a_dim), lambda i: (0, 0)),        # folded bias
            pl.BlockSpec((1, a_dim), lambda i: (0, 0)),        # v weight
        ],
        out_specs=pl.BlockSpec((rows, sl), lambda i: (i, 0)),
        compiler_params=_COMPILER_PARAMS,
    )(x2d, h2d, prepared["uw_t"], prepared["ww_t"], prepared["bias"], prepared["vw"])


def attn_bahd_precompute_uh(enc_outputs, prepared):
    """precmp_U equivalent: enc @ U once per sequence, cached in bf16, (SL, B, A)."""
    sl, b, h_dim = enc_outputs.shape
    a_dim = prepared["uw_t"].shape[1]
    x2d = enc_outputs.reshape(sl * b, h_dim).astype(jnp.bfloat16)
    rows = _rows_per_tile(b, sl, feat_bytes=2 * h_dim + 2 * a_dim)
    tf = rows * sl
    uh_flat = pl.pallas_call(
        _precompute_uh_kernel,
        out_shape=jax.ShapeDtypeStruct((sl * b, a_dim), jnp.bfloat16),
        grid=(b // rows,),
        in_specs=[
            pl.BlockSpec((tf, h_dim), lambda i: (i, 0)),
            pl.BlockSpec((h_dim, a_dim), lambda i: (0, 0)),
        ],
        out_specs=pl.BlockSpec((tf, a_dim), lambda i: (i, 0)),
        compiler_params=_COMPILER_PARAMS,
    )(x2d, prepared["uw_t"])
    return uh_flat.reshape(sl, b, a_dim)


def attn_bahd_step(prev_h_batch, uh, prepared):
    """Per-decode-step forward using the cached bf16 encoder projection uh (SL,B,A)."""
    sl, b, a_dim = uh.shape
    s_dim = prev_h_batch.shape[-1]
    h2d = prev_h_batch.reshape(b, s_dim).astype(jnp.bfloat16)
    uh2d = uh.reshape(sl * b, a_dim)

    rows = _rows_per_tile(b, sl, feat_bytes=2 * a_dim + 4 * a_dim)
    tf = rows * sl
    return pl.pallas_call(
        _attn_bahd_step_kernel,
        out_shape=jax.ShapeDtypeStruct((b, sl), jnp.float32),
        grid=(b // rows,),
        in_specs=[
            pl.BlockSpec((tf, a_dim), lambda i: (i, 0)),       # cached uh tile (bf16)
            pl.BlockSpec((b, s_dim), lambda i: (0, 0)),
            pl.BlockSpec((s_dim, a_dim), lambda i: (0, 0)),
            pl.BlockSpec((1, a_dim), lambda i: (0, 0)),
            pl.BlockSpec((1, a_dim), lambda i: (0, 0)),
        ],
        out_specs=pl.BlockSpec((rows, sl), lambda i: (i, 0)),
        compiler_params=_COMPILER_PARAMS,
    )(uh2d, h2d, prepared["ww_t"], prepared["bias"], prepared["vw"])


# ---------------------------------------------------------------------------
# Pure-JAX reference mirroring the PyTorch forward
# ---------------------------------------------------------------------------

def _ref_forward(prev_h_batch, enc_outputs, params, matmul_dtype=jnp.float32):
    """matmul_dtype=bfloat16 reproduces the kernel's MXU operand precision
    (f32 accumulation either way); float32 is the exact PyTorch-f32 math."""
    u_w, u_b, w_w, w_b, v_w, v_b = params
    sl, b, h_dim = enc_outputs.shape
    a_dim = u_w.shape[0]
    cast = lambda t: t.astype(matmul_dtype)
    uh = jnp.dot(cast(enc_outputs.reshape(-1, h_dim)), cast(u_w.T),
                 preferred_element_type=jnp.float32) + u_b
    wq = jnp.dot(cast(prev_h_batch.reshape(-1, prev_h_batch.shape[-1])), cast(w_w.T),
                 preferred_element_type=jnp.float32) + w_b
    wquh = jnp.tanh(wq[None, :, :] + uh.reshape(sl, b, a_dim))
    scores = (wquh.reshape(-1, a_dim) @ v_w.T + v_b).reshape(b, sl)
    return jax.nn.log_softmax(scores, axis=1)


if __name__ == "__main__":
    # Small shapes implied by the forward: SL=8, B=4, encoder_out_dim=32,
    # decoder_hid_dim=16, attn_dim defaults to decoder_hid_dim.
    B, SL, H, S = 4, 8, 32, 16
    A = S

    key = jax.random.PRNGKey(0)
    k = jax.random.split(key, 8)
    prev_h_batch = jax.random.normal(k[0], (1, B, S), jnp.float32)
    enc_outputs = jax.random.normal(k[1], (SL, B, H), jnp.float32)

    # Deterministic synthetic parameters (PyTorch nn.Linear shapes: (out, in), (out,)).
    params = (
        jax.random.normal(k[2], (A, H), jnp.float32) / jnp.sqrt(jnp.float32(H)),   # U.weight
        jax.random.normal(k[3], (A,), jnp.float32) * 0.1,                          # U.bias
        jax.random.normal(k[4], (A, S), jnp.float32) / jnp.sqrt(jnp.float32(S)),   # W.weight
        jax.random.normal(k[5], (A,), jnp.float32) * 0.1,                          # W.bias
        jax.random.normal(k[6], (1, A), jnp.float32) / jnp.sqrt(jnp.float32(A)),   # v.weight
        jax.random.normal(k[7], (1,), jnp.float32) * 0.1,                          # v.bias
    )

    prepared = prepare_params(params)                      # one-time weight prep
    ref_f32 = _ref_forward(prev_h_batch, enc_outputs, params)
    ref_bf16 = _ref_forward(prev_h_batch, enc_outputs, params, matmul_dtype=jnp.bfloat16)

    # 1) Fully-fused single-call forward (matches nn.Module.forward semantics).
    fwd = jax.jit(attn_bahd_forward)
    out = jax.block_until_ready(fwd(prev_h_batch, enc_outputs, prepared))
    assert out.shape == (B, SL), out.shape
    # Tight check vs. a reference with matching MXU operand precision (bf16 in, f32 acc).
    assert jnp.allclose(out, ref_bf16, atol=5e-3, rtol=5e-3), (out, ref_bf16)
    # Sanity check vs. the full-f32 reference (loose: bf16 MXU operand rounding).
    assert jnp.allclose(out, ref_f32, atol=1e-1, rtol=1e-1), (out, ref_f32)

    # 2) Decode-loop path: enc @ U cached once (bf16), per-step kernel reuses it.
    uh = jax.block_until_ready(jax.jit(attn_bahd_precompute_uh)(enc_outputs, prepared))
    out_step = jax.block_until_ready(jax.jit(attn_bahd_step)(prev_h_batch, uh, prepared))
    assert out_step.shape == (B, SL), out_step.shape
    assert jnp.allclose(out_step, out, atol=3e-2, rtol=3e-2), (out_step, out)
    assert jnp.allclose(out_step, ref_f32, atol=1e-1, rtol=1e-1), (out_step, ref_f32)

    print("KERNEL_OK")
</pallas_src>

<mosaic_0001>
module attributes {stable_mosaic.version = 11 : i64} {
  func.func @_attn_bahd_fused_kernel(%arg0: i32, %arg1: memref<32x32xbf16, #tpu.memory_space<vmem>>, %arg2: memref<4x16xbf16, #tpu.memory_space<vmem>>, %arg3: memref<32x16xbf16, #tpu.memory_space<vmem>>, %arg4: memref<16x16xbf16, #tpu.memory_space<vmem>>, %arg5: memref<1x16xf32, #tpu.memory_space<vmem>>, %arg6: memref<1x16xf32, #tpu.memory_space<vmem>>, %arg7: memref<4x8xf32, #tpu.memory_space<vmem>>) attributes {dimension_semantics = [#tpu.dimension_semantics<parallel>], iteration_bounds = array<i64: 1>, scalar_prefetch = 0 : i64, scratch_operands = 0 : i64, tpu.core_type = #tpu.core_type<tc>, window_params = [{transform_indices = @transform_0, window_bounds = array<i64: 32, 32>}, {pipeline_mode = #tpu.pipeline_mode<synchronous>, transform_indices = @transform_1, window_bounds = array<i64: 4, 16>}, {pipeline_mode = #tpu.pipeline_mode<synchronous>, transform_indices = @transform_2, window_bounds = array<i64: 32, 16>}, {pipeline_mode = #tpu.pipeline_mode<synchronous>, transform_indices = @transform_3, window_bounds = array<i64: 16, 16>}, {pipeline_mode = #tpu.pipeline_mode<synchronous>, transform_indices = @transform_4, window_bounds = array<i64: 1, 16>}, {pipeline_mode = #tpu.pipeline_mode<synchronous>, transform_indices = @transform_5, window_bounds = array<i64: 1, 16>}, {transform_indices = @transform_6, window_bounds = array<i64: 4, 8>}]} {
    %c0 = arith.constant 0 : index
    %c0_0 = arith.constant 0 : index
    %0 = vector.load %arg1[%c0, %c0_0] : memref<32x32xbf16, #tpu.memory_space<vmem>>, vector<32x32xbf16>
    %c0_1 = arith.constant 0 : index
    %c0_2 = arith.constant 0 : index
    %1 = vector.load %arg3[%c0_1, %c0_2] : memref<32x16xbf16, #tpu.memory_space<vmem>>, vector<32x16xbf16>
    %cst = arith.constant dense<0.000000e+00> : vector<32x16xf32>
    %2 = tpu.matmul %0, %1, %cst {dimension_numbers = #tpu.dot_dimension_numbers<[1], [0], [0], [1], [0, 0, 1, 1], [], []>} : vector<32x32xbf16>, vector<32x16xbf16>, vector<32x16xf32> -> vector<32x16xf32>
    %c0_3 = arith.constant 0 : index
    %c0_4 = arith.constant 0 : index
    %3 = vector.load %arg2[%c0_3, %c0_4] : memref<4x16xbf16, #tpu.memory_space<vmem>>, vector<4x16xbf16>
    %c0_5 = arith.constant 0 : index
    %c0_6 = arith.constant 0 : index
    %4 = vector.load %arg4[%c0_5, %c0_6] : memref<16x16xbf16, #tpu.memory_space<vmem>>, vector<16x16xbf16>
    %cst_7 = arith.constant dense<0.000000e+00> : vector<4x16xf32>
    %5 = tpu.matmul %3, %4, %cst_7 {dimension_numbers = #tpu.dot_dimension_numbers<[1], [0], [0], [1], [0, 0, 1, 1], [], []>} : vector<4x16xbf16>, vector<16x16xbf16>, vector<4x16xf32> -> vector<4x16xf32>
    %c0_8 = arith.constant 0 : index
    %c0_9 = arith.constant 0 : index
    %6 = vector.load %arg5[%c0_8, %c0_9] : memref<1x16xf32, #tpu.memory_space<vmem>>, vector<1x16xf32>
    %7 = vector.broadcast %6 : vector<1x16xf32> to vector<4x16xf32>
    %8 = arith.addf %5, %7 : vector<4x16xf32>
    %c32_i32 = arith.constant 32 : i32
    %9 = arith.muli %arg0, %c32_i32 : i32
    %10 = tpu.iota {dimensions = array<i32: 0>} : vector<32x4xi32>
    %11 = vector.broadcast %9 : i32 to vector<32x4xi32>
    %12 = arith.addi %11, %10 : vector<32x4xi32>
    %13 = tpu.iota {dimensions = array<i32: 1>} : vector<32x4xi32>
    %c4_i32 = arith.constant 4 : i32
    %c0_i32 = arith.constant 0 : i32
    %14 = arith.cmpi eq, %c4_i32, %c0_i32 : i32
    %c1_i32 = arith.constant 1 : i32
    %15 = arith.select %14, %c1_i32, %c4_i32 : i32
    %16 = vector.broadcast %15 : i32 to vector<32x4xi32>
    %17 = arith.remsi %12, %16 : vector<32x4xi32>
    %c0_i32_10 = arith.constant 0 : i32
    %18 = vector.broadcast %c0_i32_10 : i32 to vector<32x4xi32>
    %19 = arith.cmpi ne, %17, %18 : vector<32x4xi32>
    %c0_i32_11 = arith.constant 0 : i32
    %20 = vector.broadcast %c0_i32_11 : i32 to vector<32x4xi32>
    %21 = arith.cmpi slt, %17, %20 : vector<32x4xi32>
    %c0_i32_12 = arith.constant 0 : i32
    %22 = arith.cmpi slt, %15, %c0_i32_12 : i32
    %23 = vector.broadcast %22 : i1 to vector<32x4xi1>
    %24 = vector.broadcast %23 : vector<32x4xi1> to vector<32x4xi1>
    %25 = arith.xori %21, %24 : vector<32x4xi1>
    %26 = arith.andi %25, %19 : vector<32x4xi1>
    %27 = vector.broadcast %15 : i32 to vector<32x4xi32>
    %28 = arith.addi %17, %27 : vector<32x4xi32>
    %29 = arith.select %26, %28, %17 : vector<32x4xi1>, vector<32x4xi32>
    %30 = arith.cmpi eq, %29, %13 : vector<32x4xi32>
    %31 = arith.extui %30 : vector<32x4xi1> to vector<32x4xi32>
    %32 = arith.sitofp %31 : vector<32x4xi32> to vector<32x4xf32>
    %cst_13 = arith.constant dense<0.000000e+00> : vector<32x16xf32>
    %33 = tpu.matmul %32, %8, %cst_13 {dimension_numbers = #tpu.dot_dimension_numbers<[1], [0], [0], [1], [0, 0, 1, 1], [], []>} : vector<32x4xf32>, vector<4x16xf32>, vector<32x16xf32> -> vector<32x16xf32>
    %34 = arith.addf %2, %33 : vector<32x16xf32>
    %35 = math.tanh %34 : vector<32x16xf32>
    %c0_14 = arith.constant 0 : index
    %c0_15 = arith.constant 0 : index
    %36 = vector.load %arg6[%c0_14, %c0_15] : memref<1x16xf32, #tpu.memory_space<vmem>>, vector<1x16xf32>
    %37 = vector.broadcast %36 : vector<1x16xf32> to vector<32x16xf32>
    %38 = arith.mulf %35, %37 : vector<32x16xf32>
    %cst_16 = arith.constant dense<0.000000e+00> : vector<32xf32>
    %39 = vector.multi_reduction <add>, %38, %cst_16 [1] : vector<32x16xf32> to vector<32xf32>
    %40 = vector.shape_cast %39 : vector<32xf32> to vector<32x1xf32>
    %41 = tpu.iota {dimensions = array<i32: 0>} : vector<32x8xi32>
    %42 = tpu.iota {dimensions = array<i32: 1>} : vector<32x8xi32>
    %c8_i32 = arith.constant 8 : i32
    %c0_i32_17 = arith.constant 0 : i32
    %43 = arith.cmpi eq, %c8_i32, %c0_i32_17 : i32
    %c1_i32_18 = arith.constant 1 : i32
    %44 = arith.select %43, %c1_i32_18, %c8_i32 : i32
    %45 = vector.broadcast %44 : i32 to vector<32x8xi32>
    %46 = arith.remsi %41, %45 : vector<32x8xi32>
    %c0_i32_19 = arith.constant 0 : i32
    %47 = vector.broadcast %c0_i32_19 : i32 to vector<32x8xi32>
    %48 = arith.cmpi ne, %46, %47 : vector<32x8xi32>
    %c0_i32_20 = arith.constant 0 : i32
    %49 = vector.broadcast %c0_i32_20 : i32 to vector<32x8xi32>
    %50 = arith.cmpi slt, %46, %49 : vector<32x8xi32>
    %c0_i32_21 = arith.constant 0 : i32
    %51 = arith.cmpi slt, %44, %c0_i32_21 : i32
    %52 = vector.broadcast %51 : i1 to vector<32x8xi1>
    %53 = vector.broadcast %52 : vector<32x8xi1> to vector<32x8xi1>
    %54 = arith.xori %50, %53 : vector<32x8xi1>
    %55 = arith.andi %54, %48 : vector<32x8xi1>
    %56 = vector.broadcast %44 : i32 to vector<32x8xi32>
    %57 = arith.addi %46, %56 : vector<32x8xi32>
    %58 = arith.select %55, %57, %46 : vector<32x8xi1>, vector<32x8xi32>
    %59 = arith.cmpi eq, %58, %42 : vector<32x8xi32>
    %60 = arith.extui %59 : vector<32x8xi1> to vector<32x8xi32>
    %61 = arith.sitofp %60 : vector<32x8xi32> to vector<32x8xf32>
    %62 = tpu.iota {dimensions = array<i32: 0>} : vector<4x32xi32>
    %63 = tpu.iota {dimensions = array<i32: 1>} : vector<4x32xi32>
    %c8_i32_22 = arith.constant 8 : i32
    %64 = vector.broadcast %c8_i32_22 : i32 to vector<4x32xi32>
    %65 = arith.muli %62, %64 : vector<4x32xi32>
    %66 = arith.cmpi sge, %63, %65 : vector<4x32xi32>
    %c1_i32_23 = arith.constant 1 : i32
    %67 = vector.broadcast %c1_i32_23 : i32 to vector<4x32xi32>
    %68 = arith.addi %62, %67 : vector<4x32xi32>
    %c8_i32_24 = arith.constant 8 : i32
    %69 = vector.broadcast %c8_i32_24 : i32 to vector<4x32xi32>
    %70 = arith.muli %68, %69 : vector<4x32xi32>
    %71 = arith.cmpi slt, %63, %70 : vector<4x32xi32>
    %72 = arith.andi %66, %71 : vector<4x32xi1>
    %73 = arith.extui %72 : vector<4x32xi1> to vector<4x32xi32>
    %74 = arith.sitofp %73 : vector<4x32xi32> to vector<4x32xf32>
    %75 = vector.broadcast %40 : vector<32x1xf32> to vector<32x8xf32>
    %76 = arith.mulf %61, %75 : vector<32x8xf32>
    %cst_25 = arith.constant dense<0.000000e+00> : vector<4x8xf32>
    %77 = tpu.matmul %74, %76, %cst_25 {dimension_numbers = #tpu.dot_dimension_numbers<[1], [0], [0], [1], [0, 0, 1, 1], [], []>} : vector<4x32xf32>, vector<32x8xf32>, vector<4x8xf32> -> vector<4x8xf32>
    %cst_26 = arith.constant dense<0xFF800000> : vector<4xf32>
    %78 = vector.multi_reduction <maximumf>, %77, %cst_26 [1] : vector<4x8xf32> to vector<4xf32>
    %79 = vector.shape_cast %78 : vector<4xf32> to vector<4x1xf32>
    %80 = vector.broadcast %79 : vector<4x1xf32> to vector<4x8xf32>
    %81 = arith.subf %77, %80 : vector<4x8xf32>
    %82 = math.exp %81 : vector<4x8xf32>
    %cst_27 = arith.constant dense<0.000000e+00> : vector<4xf32>
    %83 = vector.multi_reduction <add>, %82, %cst_27 [1] : vector<4x8xf32> to vector<4xf32>
    %84 = vector.shape_cast %83 : vector<4xf32> to vector<4x1xf32>
    %85 = math.log %84 : vector<4x1xf32>
    %86 = vector.broadcast %85 : vector<4x1xf32> to vector<4x8xf32>
    %87 = arith.subf %81, %86 : vector<4x8xf32>
    %c0_28 = arith.constant 0 : index
    %c0_29 = arith.constant 0 : index
    %88 = vector.load %arg7[%c0_28, %c0_29] : memref<4x8xf32, #tpu.memory_space<vmem>>, vector<4x8xf32>
    tpu.vector_store %arg7[%c0_28, %c0_29], %87 {strides = array<i32>} : memref<4x8xf32, #tpu.memory_space<vmem>>, vector<4x8xf32>,
    return
  }
  func.func @transform_0(%arg0: i32) -> (i32, i32) {
    %c0_i32 = arith.constant 0 : i32
    %c0_i32_0 = arith.constant 0 : i32
    return %arg0, %c0_i32 : i32, i32
  }
  func.func @transform_1(%arg0: i32) -> (i32, i32) {
    %c0_i32 = arith.constant 0 : i32
    %c0_i32_0 = arith.constant 0 : i32
    %c0_i32_1 = arith.constant 0 : i32
    return %c0_i32, %c0_i32_0 : i32, i32
  }
  func.func @transform_2(%arg0: i32) -> (i32, i32) {
    %c0_i32 = arith.constant 0 : i32
    %c0_i32_0 = arith.constant 0 : i32
    %c0_i32_1 = arith.constant 0 : i32
    return %c0_i32, %c0_i32_0 : i32, i32
  }
  func.func @transform_3(%arg0: i32) -> (i32, i32) {
    %c0_i32 = arith.constant 0 : i32
    %c0_i32_0 = arith.constant 0 : i32
    %c0_i32_1 = arith.constant 0 : i32
    return %c0_i32, %c0_i32_0 : i32, i32
  }
  func.func @transform_4(%arg0: i32) -> (i32, i32) {
    %c0_i32 = arith.constant 0 : i32
    %c0_i32_0 = arith.constant 0 : i32
    %c0_i32_1 = arith.constant 0 : i32
    return %c0_i32, %c0_i32_0 : i32, i32
  }
  func.func @transform_5(%arg0: i32) -> (i32, i32) {
    %c0_i32 = arith.constant 0 : i32
    %c0_i32_0 = arith.constant 0 : i32
    %c0_i32_1 = arith.constant 0 : i32
    return %c0_i32, %c0_i32_0 : i32, i32
  }
  func.func @transform_6(%arg0: i32) -> (i32, i32) {
    %c0_i32 = arith.constant 0 : i32
    %c0_i32_0 = arith.constant 0 : i32
    return %arg0, %c0_i32 : i32, i32
  }
}

</mosaic_0001>

<llo_original>
// kernel: attn_bahd_forward.1
$region0: #{attn_bahd_forward.1}
  #allocation0 [shape = 'u32[]', space=smem, size = 0x4, offset = 0x4, fixed_abs, tag = 'smem constant byte address 0x4 - core index']
  #allocation1 [shape = 'u32[144,128]{1,0:T(1,128)}', space=vmem, size = 0x12000, scoped, tag = 'internal scratch']
  %s0 = inlined_call_operand.vmem [shape: bf16[32,32], index: 0, kind: input, shape index: {}]
  %s1 = inlined_call_operand.vmem [shape: bf16[4,16], index: 1, kind: input, shape index: {}]
  %s2 = inlined_call_operand.vmem [shape: bf16[32,16], index: 2, kind: input, shape index: {}]
  %s3 = inlined_call_operand.vmem [shape: bf16[16,16], index: 3, kind: input, shape index: {}]
  %s4 = inlined_call_operand.vmem [shape: f32[1,16], index: 4, kind: input, shape index: {}]
  %s5 = inlined_call_operand.vmem [shape: f32[1,16], index: 5, kind: input, shape index: {}]
  %s6 = inlined_call_operand.hbm [shape: f32[4,8], index: 6, kind: output, shape index: {}]
  %s7 = sld [smem:[#allocation0]]
  $region34: #{attn_bahd_forward.1} parent=0
    _
  %s9 = ssub.s32 1, %s7
  %s10 = scalar_select 0, %s9, %s7
  $region1: #{attn_bahd_forward.1} parent=0
    #allocation2 [shape = 'u8[2048]{0}', space=vmem, size = 0x800, scoped, tag = 'output window, operand 0, single buffered']
    #allocation3 [shape = 's32[1]{0}', space=sflag, size = 0x4, scoped, tag = 'scoped memory for attn_bahd_forward.1']
    %11 = vsyncpa [#allocation3], 0
    // Predicated region
    $region2: #{attn_bahd_forward.1} parent=1 // pred_check
      _
    $region3: #{attn_bahd_forward.1} parent=1 // pred_check_branch
      %13 = sbr.rel (0) target = $region5
    $region4: #{attn_bahd_forward.1} parent=1 // pred_region
      _
    $region5: #{attn_bahd_forward.1} parent=1 // pred_fallthru
      _
    // Predicated region
    $region6: #{attn_bahd_forward.1} parent=1 // pred_check
      _
    $region7: #{attn_bahd_forward.1} parent=1 // pred_check_branch
      %15 = sbr.rel (0) target = $region9
    $region8: #{attn_bahd_forward.1} parent=1 // pred_region
      _
    $region9: #{attn_bahd_forward.1} parent=1 // pred_fallthru
      _
    // Predicated region
    $region10: #{attn_bahd_forward.1} parent=1 // pred_check
      _
    $region11: #{attn_bahd_forward.1} parent=1 // pred_check_branch
      %17 = sbr.rel (0) target = $region13
    $region12: #{attn_bahd_forward.1} parent=1 // pred_region
      _
    $region13: #{attn_bahd_forward.1} parent=1 // pred_fallthru
      _
    // Predicated region
    $region14: #{attn_bahd_forward.1} parent=1 // pred_check
      _
    $region15: #{attn_bahd_forward.1} parent=1 // pred_check_branch
      %19 = sbr.rel (0) target = $region17
    $region16: #{attn_bahd_forward.1} parent=1 // pred_region
      _
    $region17: #{attn_bahd_forward.1} parent=1 // pred_fallthru
      _
    // Predicated region
    $region18: #{attn_bahd_forward.1} parent=1 // pred_check
      _
    $region19: #{attn_bahd_forward.1} parent=1 // pred_check_branch
      %21 = sbr.rel (0) target = $region21
    $region20: #{attn_bahd_forward.1} parent=1 // pred_region
      _
    $region21: #{attn_bahd_forward.1} parent=1 // pred_fallthru
      _
    // Predicated region
    $region22: #{attn_bahd_forward.1} parent=1 // pred_check
      _
    $region23: #{attn_bahd_forward.1} parent=1 // pred_check_branch
      %23 = sbr.rel (0) target = $region25
    $region24: #{attn_bahd_forward.1} parent=1 // pred_region
      _
    $region25: #{attn_bahd_forward.1} parent=1 // pred_fallthru
      _
    %v25 = vld [vmem:[%s0] sm:$0xf]
    %v26 = vld [vmem:[%s0 + $0x4] sm:$0xf]
    %v27 = vld [vmem:[%s0 + $0x8] sm:$0xf]
    %v28 = vld [vmem:[%s0 + $0xc] sm:$0xf]
    %v29 = vld [vmem:[%s2] sm:$0xf]
    %v30 = vld [vmem:[%s2 + $0x4] sm:$0xf]
    %v31 = vld [vmem:[%s2 + $0x8] sm:$0xf]
    %v32 = vld [vmem:[%s2 + $0xc] sm:$0xf]
    %v33 = vld [vmem:[%s1] sm:$0x3]
    %v34 = vld [vmem:[%s3] sm:$0xf]
    %v35 = vld [vmem:[%s3 + $0x4] sm:$0xf]
    %v36 = vld [vmem:[%s4] sm:$0x1]
    %v38 = vlaneseq
    %v39 = vshrl.u32 %v38, 7
    %v40 = vsub.s32 0, %v39
    %v41 = vrot.slane %v36, %v40
    %v45 = vunpack.c.l.b16 %v34
    %v46 = vunpack.c.l.b16 %v35
    %v47 = vpack.c.b16 %v46, %v45
    %vm49 = vcmask 130048
    %v51 = vsel %vm49, %v33, 0
    %53 = vmatprep.subr.bf16.mxu0 0
    %54 = vmatpush1.bf16.msra.mxu0 %v47
    %55 = vmatprep.subr.bf16.mxu0 0
    %56 = vmatpush1.bf16.msra.mxu0 0
    %57 = vmatprep.subr.bf16.mxu0 0
    %58 = vmatpush1.bf16.msra.mxu0 0
    %59 = vmatprep.subr.bf16.mxu0 0
    %60 = vmatpush1.bf16.msra.mxu0 0
    %61 = vmatprep.subr.bf16.mxu0 0
    %62 = vmatpush1.bf16.msra.mxu0 0
    %63 = vmatprep.subr.bf16.mxu0 0
    %64 = vmatpush1.bf16.msra.mxu0 0
    %65 = vmatprep.subr.bf16.mxu0 0
    %66 = vmatpush1.bf16.msra.mxu0 0
    %67 = vmatprep.subr.bf16.mxu0 0
    %68 = vmatpush1.bf16.msra.mxu0 0
    %69 = vmatprep.subr.bf16.mxu0 0
    %70 = vmatpush1.bf16.msra.mxu0 0
    %71 = vmatprep.subr.bf16.mxu0 0
    %72 = vmatpush1.bf16.msra.mxu0 0
    %73 = vmatprep.subr.bf16.mxu0 0
    %74 = vmatpush1.bf16.msra.mxu0 0
    %75 = vmatprep.subr.bf16.mxu0 0
    %76 = vmatpush1.bf16.msra.mxu0 0
    %77 = vmatprep.subr.bf16.mxu0 0
    %78 = vmatpush1.bf16.msra.mxu0 0
    %79 = vmatprep.subr.bf16.mxu0 0
    %80 = vmatpush1.bf16.msra.mxu0 0
    %81 = vmatprep.subr.bf16.mxu0 0
    %82 = vmatpush1.bf16.msra.mxu0 0
    %83 = vmatprep.subr.bf16.mxu0 0
    %84 = vmatpush1.bf16.msra.mxu0 0
    %85 = vmatprep.mubr.bf16.mxu0 0
    %86 = vmatmul.mubr.bf16.gmra.mrb[0].mxu0 %v51
    %v87 = vpop.f32.mrb[0].mxu0
    %v88 = vadd.f32 %v41, %v87
    %v89 = vpop.f32.mrb[0].mxu0
    %v90 = vpop.f32.mrb[0].mxu0
    %v91 = vpop.f32.mrb[0].mxu0
    %92 = vdwg.mxu0
    %s93 = smul.u32 0, 32
    %v94 = vlaneseq
    %v95 = vshrl.u32 %v94, 7
    %v96 = vadd.s32 %v95, 8
    %v97 = vadd.s32 %v95, 16
    %v98 = vadd.s32 %v95, 24
    %v99 = vstv %s93
    %v100 = vadd.s32 %v99, %v95
    %v101 = vadd.s32 %v99, %v96
    %v102 = vadd.s32 %v99, %v97
    %v103 = vadd.s32 %v99, %v98
    %v104 = vlaneseq
    %v105 = vand.u32 %v104, 127
    %vm106 = vcmp.lt.s32.totalorder %v100, 0
    %v107 = vsub.s32 0, %v100
    %v108 = vsel %vm106, %v107, %v100
    %v109 = vshrl.u32 %v108, 2
    %v110 = vand.u32 %v108, 3
    %v111 = vsub.s32 0, %v110
    %v112 = vsel %vm106, %v111, %v110
    %vm113 = vcmp.lt.s32.totalorder %v101, 0
    %v114 = vsub.s32 0, %v101
    %v115 = vsel %vm113, %v114, %v101
    %v116 = vshrl.u32 %v115, 2
    %v117 = vand.u32 %v115, 3
    %v118 = vsub.s32 0, %v117
    %v119 = vsel %vm113, %v118, %v117
    %vm120 = vcmp.lt.s32.totalorder %v102, 0
    %v121 = vsub.s32 0, %v102
    %v122 = vsel %vm120, %v121, %v102
    %v123 = vshrl.u32 %v122, 2
    %v124 = vand.u32 %v122, 3
    %v125 = vsub.s32 0, %v124
    %v126 = vsel %vm120, %v125, %v124
    %vm127 = vcmp.lt.s32.totalorder %v103, 0
    %v128 = vsub.s32 0, %v103
    %v129 = vsel %vm127, %v128, %v103
    %v130 = vshrl.u32 %v129, 2
    %v131 = vand.u32 %v129, 3
    %v132 = vsub.s32 0, %v131
    %v133 = vsel %vm127, %v132, %v131
    %vm134 = vcmp.ne.s32.totalorder %v112, 0
    %vm135 = vcmp.ne.s32.totalorder %v119, 0
    %vm136 = vcmp.ne.s32.totalorder %v126, 0
    %vm137 = vcmp.ne.s32.totalorder %v133, 0
    %vm138 = vcmp.lt.s32.totalorder %v112, 0
    %vm139 = vcmp.lt.s32.totalorder %v119, 0
    %vm140 = vcmp.lt.s32.totalorder %v126, 0
    %vm141 = vcmp.lt.s32.totalorder %v133, 0
    %vm142 = vmand %vm138, %vm134
    %vm143 = vmand %vm139, %vm135
    %vm144 = vmand %vm140, %vm136
    %vm145 = vmand %vm141, %vm137
    %v146 = vadd.s32 %v112, 4
    %v147 = vadd.s32 %v119, 4
    %v148 = vadd.s32 %v126, 4
    %v149 = vadd.s32 %v133, 4
    %v150 = vsel %vm142, %v146, %v112
    %v151 = vsel %vm143, %v147, %v119
    %v152 = vsel %vm144, %v148, %v126
    %v153 = vsel %vm145, %v149, %v133
    %vm154 = vcmp.eq.s32.totalorder %v150, %v105
    %vm155 = vcmp.eq.s32.totalorder %v151, %v105
    %vm156 = vcmp.eq.s32.totalorder %v152, %v105
    %vm157 = vcmp.eq.s32.totalorder %v153, %v105
    %v158 = vsel %vm154, 1, 0
    %v159 = vsel %vm155, 1, 0
    %v160 = vsel %vm156, 1, 0
    %v161 = vsel %vm157, 1, 0
    %v162 = vcvt.s32.f32 %v158
    %v163 = vcvt.s32.f32 %v159
    %v164 = vcvt.s32.f32 %v160
    %v165 = vcvt.s32.f32 %v161
    %vm166 = vcmask 31744
    %v168 = vsel %vm166, %v162, 0
    %v171 = vsel %vm166, %v163, 0
    %v174 = vsel %vm166, %v164, 0
    %v177 = vsel %vm166, %v165, 0
    %vm179 = vcmask 1043456
    %v181 = vsel %vm179, %v88, 0
    %183 = vmatprep.subr.mxu0 0.0
    %184 = vmatpush1.msra.mxu0 %v181
    %185 = vmatprep.subr.mxu0 0.0
    %186 = vmatpush1.msra.mxu0 0.0
    %187 = vmatprep.subr.mxu0 0.0
    %188 = vmatpush1.msra.mxu0 0.0
    %189 = vmatprep.subr.mxu0 0.0
    %190 = vmatpush1.msra.mxu0 0.0
    %191 = vmatprep.subr.mxu0 0.0
    %192 = vmatpush1.msra.mxu0 0.0
    %193 = vmatprep.subr.mxu0 0.0
    %194 = vmatpush1.msra.mxu0 0.0
    %195 = vmatprep.subr.mxu0 0.0
    %196 = vmatpush1.msra.mxu0 0.0
    %197 = vmatprep.subr.mxu0 0.0
    %198 = vmatpush1.msra.mxu0 0.0
    %199 = vmatprep.subr.mxu0 0.0
    %200 = vmatpush1.msra.mxu0 0.0
    %201 = vmatprep.subr.mxu0 0.0
    %202 = vmatpush1.msra.mxu0 0.0
    %203 = vmatprep.subr.mxu0 0.0
    %204 = vmatpush1.msra.mxu0 0.0
    %205 = vmatprep.subr.mxu0 0.0
    %206 = vmatpush1.msra.mxu0 0.0
    %207 = vmatprep.subr.mxu0 0.0
    %208 = vmatpush1.msra.mxu0 0.0
    %209 = vmatprep.subr.mxu0 0.0
    %210 = vmatpush1.msra.mxu0 0.0
    %211 = vmatprep.subr.mxu0 0.0
    %212 = vmatpush1.msra.mxu0 0.0
    %213 = vmatprep.subr.mxu0 0.0
    %214 = vmatpush1.msra.mxu0 0.0
    %215 = vmatprep.subr.mxu0 0.0
    %216 = vmatpush1.msra.mxu0 0.0
    %217 = vmatprep.subr.mxu0 0.0
    %218 = vmatpush1.msra.mxu0 0.0
    %219 = vmatprep.subr.mxu0 0.0
    %220 = vmatpush1.msra.mxu0 0.0
    %221 = vmatprep.subr.mxu0 0.0
    %222 = vmatpush1.msra.mxu0 0.0
    %223 = vmatprep.subr.mxu0 0.0
    %224 = vmatpush1.msra.mxu0 0.0
    %225 = vmatprep.subr.mxu0 0.0
    %226 = vmatpush1.msra.mxu0 0.0
    %227 = vmatprep.subr.mxu0 0.0
    %228 = vmatpush1.msra.mxu0 0.0
    %229 = vmatprep.subr.mxu0 0.0
    %230 = vmatpush1.msra.mxu0 0.0
    %231 = vmatprep.subr.mxu0 0.0
    %232 = vmatpush1.msra.mxu0 0.0
    %233 = vmatprep.subr.mxu0 0.0
    %234 = vmatpush1.msra.mxu0 0.0
    %235 = vmatprep.subr.mxu0 0.0
    %236 = vmatpush1.msra.mxu0 0.0
    %237 = vmatprep.subr.mxu0 0.0
    %238 = vmatpush1.msra.mxu0 0.0
    %239 = vmatprep.subr.mxu0 0.0
    %240 = vmatpush1.msra.mxu0 0.0
    %241 = vmatprep.subr.mxu0 0.0
    %242 = vmatpush1.msra.mxu0 0.0
    %243 = vmatprep.subr.mxu0 0.0
    %244 = vmatpush1.msra.mxu0 0.0
    %245 = vmatprep.subr.mxu0 0.0
    %246 = vmatpush1.msra.mxu0 0.0
    %247 = vmatprep.mubr.f32.mxu0 0.0
    %248 = vmatmul.mubr.f32.gmra.mrb[0].mxu0 %v168
    %v249 = vpop.f32.mrb[0].mxu0
    %v250 = vadd.f32 0.0, %v249
    %v251 = vpop.f32.mrb[0].mxu0
    %252 = vmatprep.mubr.f32.mxu0 0.0
    %253 = vmatmul.mubr.f32.gmra.mrb[0].mxu0 %v171
    %v254 = vpop.f32.mrb[0].mxu0
    %v255 = vadd.f32 0.0, %v254
    %v256 = vpop.f32.mrb[0].mxu0
    %257 = vmatprep.mubr.f32.mxu0 0.0
    %258 = vmatmul.mubr.f32.gmra.mrb[0].mxu0 %v174
    %v259 = vpop.f32.mrb[0].mxu0
    %v260 = vadd.f32 0.0, %v259
    %v261 = vpop.f32.mrb[0].mxu0
    %262 = vmatprep.mubr.f32.mxu0 0.0
    %263 = vmatmul.mubr.f32.gmra.mrb[0].mxu0 %v177
    %v264 = vpop.f32.mrb[0].mxu0
    %v265 = vadd.f32 0.0, %v264
    %v266 = vpop.f32.mrb[0].mxu0
    %267 = vdwg.mxu0
    %v272 = vunpack.c.l.b16 %v25
    %v273 = vunpack.c.l.b16 %v26
    %v274 = vunpack.c.l.b16 %v27
    %v275 = vunpack.c.l.b16 %v28
    %v276 = vpack.c.b16 %v273, %v272
    %v277 = vpack.c.b16 %v275, %v274
    %v282 = vunpack.c.l.b16 %v29
    %v283 = vunpack.c.l.b16 %v30
    %v284 = vunpack.c.l.b16 %v31
    %v285 = vunpack.c.l.b16 %v32
    %v286 = vpack.c.b16 %v283, %v282
    %v287 = vpack.c.b16 %v285, %v284
    %vm290 = vcmask 261120
    %v292 = vsel %vm290, %v276, 0
    %v295 = vsel %vm290, %v277, 0
    %297 = vmatprep.subr.bf16.mxu0 0
    %298 = vmatpush1.bf16.msra.mxu0 %v286
    %299 = vmatprep.subr.bf16.mxu0 0
    %300 = vmatpush1.bf16.msra.mxu0 %v287
    %301 = vmatprep.subr.bf16.mxu0 0
    %302 = vmatpush1.bf16.msra.mxu0 0
    %303 = vmatprep.subr.bf16.mxu0 0
    %304 = vmatpush1.bf16.msra.mxu0 0
    %305 = vmatprep.subr.bf16.mxu0 0
    %306 = vmatpush1.bf16.msra.mxu0 0
    %307 = vmatprep.subr.bf16.mxu0 0
    %308 = vmatpush1.bf16.msra.mxu0 0
    %309 = vmatprep.subr.bf16.mxu0 0
    %310 = vmatpush1.bf16.msra.mxu0 0
    %311 = vmatprep.subr.bf16.mxu0 0
    %312 = vmatpush1.bf16.msra.mxu0 0
    %313 = vmatprep.subr.bf16.mxu0 0
    %314 = vmatpush1.bf16.msra.mxu0 0
    %315 = vmatprep.subr.bf16.mxu0 0
    %316 = vmatpush1.bf16.msra.mxu0 0
    %317 = vmatprep.subr.bf16.mxu0 0
    %318 = vmatpush1.bf16.msra.mxu0 0
    %319 = vmatprep.subr.bf16.mxu0 0
    %320 = vmatpush1.bf16.msra.mxu0 0
    %321 = vmatprep.subr.bf16.mxu0 0
    %322 = vmatpush1.bf16.msra.mxu0 0
    %323 = vmatprep.subr.bf16.mxu0 0
    %324 = vmatpush1.bf16.msra.mxu0 0
    %325 = vmatprep.subr.bf16.mxu0 0
    %326 = vmatpush1.bf16.msra.mxu0 0
    %327 = vmatprep.subr.bf16.mxu0 0
    %328 = vmatpush1.bf16.msra.mxu0 0
    %329 = vmatprep.mubr.bf16.mxu0 0
    %330 = vmatmul.mubr.bf16.gmra.mrb[0].mxu0 %v292
    %v331 = vpop.f32.mrb[0].mxu0
    %v332 = vadd.f32 %v250, %v331
    %v333 = vpop.f32.mrb[0].mxu0
    %v334 = vpop.f32.mrb[0].mxu0
    %v335 = vadd.f32 %v255, %v334
    %v336 = vpop.f32.mrb[0].mxu0
    %337 = vmatprep.mubr.bf16.mxu0 0
    %338 = vmatmul.mubr.bf16.gmra.mrb[0].mxu0 %v295
    %v339 = vpop.f32.mrb[0].mxu0
    %v340 = vadd.f32 %v260, %v339
    %v341 = vpop.f32.mrb[0].mxu0
    %v342 = vpop.f32.mrb[0].mxu0
    %v343 = vadd.f32 %v265, %v342
    %v344 = vpop.f32.mrb[0].mxu0
    %345 = vdwg.mxu0
    %v346 = vtanh.pop %v332
    %v347 = vtanh.pop %v335
    %v348 = vtanh.pop %v340
    %v349 = vtanh.pop %v343
    %v350 = vld [vmem:[%s5] sm:$0x1]
    %v352 = vlaneseq
    %v353 = vshrl.u32 %v352, 7
    %v354 = vsub.s32 0, %v353
    %v355 = vrot.slane %v350, %v354
    %v357 = vmul.f32 %v346, %v355
    %v358 = vmul.f32 %v347, %v355
    %v359 = vmul.f32 %v348, %v355
    %v360 = vmul.f32 %v349, %v355
    %v361 = vsel %vm49, %v357, 0.0
    %362 = vadd.xlane.f32.xlu0 %v361
    %v363 = vpop.xlane.xlu0 %362
    %v364 = vsel %vm49, %v358, 0.0
    %365 = vadd.xlane.f32.xlu0 %v364
    %v366 = vpop.xlane.xlu0 %365
    %v367 = vsel %vm49, %v359, 0.0
    %368 = vadd.xlane.f32.xlu0 %v367
    %v369 = vpop.xlane.xlu0 %368
    %v370 = vsel %vm49, %v360, 0.0
    %371 = vadd.xlane.f32.xlu0 %v370
    %v372 = vpop.xlane.xlu0 %371
    %vm373 = vcmp.lt.s32.totalorder %v95, 0
    %v374 = vsub.s32 0, %v95
    %v375 = vsel %vm373, %v374, %v95
    %v376 = vshrl.u32 %v375, 3
    %v377 = vand.u32 %v375, 7
    %v378 = vsub.s32 0, %v377
    %v379 = vsel %vm373, %v378, %v377
    %vm380 = vcmp.lt.s32.totalorder %v96, 0
    %v381 = vsub.s32 0, %v96
    %v382 = vsel %vm380, %v381, %v96
    %v383 = vshrl.u32 %v382, 3
    %v384 = vand.u32 %v382, 7
    %v385 = vsub.s32 0, %v384
    %v386 = vsel %vm380, %v385, %v384
    %vm387 = vcmp.lt.s32.totalorder %v97, 0
    %v388 = vsub.s32 0, %v97
    %v389 = vsel %vm387, %v388, %v97
    %v390 = vshrl.u32 %v389, 3
    %v391 = vand.u32 %v389, 7
    %v392 = vsub.s32 0, %v391
    %v393 = vsel %vm387, %v392, %v391
    %vm394 = vcmp.lt.s32.totalorder %v98, 0
    %v395 = vsub.s32 0, %v98
    %v396 = vsel %vm394, %v395, %v98
    %v397 = vshrl.u32 %v396, 3
    %v398 = vand.u32 %v396, 7
    %v399 = vsub.s32 0, %v398
    %v400 = vsel %vm394, %v399, %v398
    %vm401 = vcmp.ne.s32.totalorder %v379, 0
    %vm402 = vcmp.ne.s32.totalorder %v386, 0
    %vm403 = vcmp.ne.s32.totalorder %v393, 0
    %vm404 = vcmp.ne.s32.totalorder %v400, 0
    %vm405 = vcmp.lt.s32.totalorder %v379, 0
    %vm406 = vcmp.lt.s32.totalorder %v386, 0
    %vm407 = vcmp.lt.s32.totalorder %v393, 0
    %vm408 = vcmp.lt.s32.totalorder %v400, 0
    %vm409 = vmand %vm405, %vm401
    %vm410 = vmand %vm406, %vm402
    %vm411 = vmand %vm407, %vm403
    %vm412 = vmand %vm408, %vm404
    %v413 = vadd.s32 %v379, 8
    %v414 = vadd.s32 %v386, 8
    %v415 = vadd.s32 %v393, 8
    %v416 = vadd.s32 %v400, 8
    %v417 = vsel %vm409, %v413, %v379
    %v418 = vsel %vm410, %v414, %v386
    %v419 = vsel %vm411, %v415, %v393
    %v420 = vsel %vm412, %v416, %v400
    %vm421 = vcmp.eq.s32.totalorder %v417, %v105
    %vm422 = vcmp.eq.s32.totalorder %v418, %v105
    %vm423 = vcmp.eq.s32.totalorder %v419, %v105
    %vm424 = vcmp.eq.s32.totalorder %v420, %v105
    %v425 = vsel %vm421, 1, 0
    %v426 = vsel %vm422, 1, 0
    %v427 = vsel %vm423, 1, 0
    %v428 = vsel %vm424, 1, 0
    %v429 = vcvt.s32.f32 %v425
    %v430 = vcvt.s32.f32 %v426
    %v431 = vcvt.s32.f32 %v427
    %v432 = vcvt.s32.f32 %v428
    %v433 = vmul.u32 %v95, 8
    %vm434 = vcmp.ge.s32.totalorder %v105, %v433
    %v435 = vadd.s32 %v95, 1
    %v436 = vmul.u32 %v435, 8
    %vm437 = vcmp.lt.s32.totalorder %v105, %v436
    %vm438 = vmand %vm434, %vm437
    %v439 = vsel %vm438, 1, 0
    %v440 = vcvt.s32.f32 %v439
    %v441 = vmul.f32 %v429, %v363
    %v442 = vmul.f32 %v430, %v366
    %v443 = vmul.f32 %v431, %v369
    %v444 = vmul.f32 %v432, %v372
    %v446 = vsel %vm290, %v440, 0
    %448 = vmatprep.subr.mxu0 0.0
    %449 = vmatpush1.msra.mxu0 %v441
    %450 = vmatprep.subr.mxu0 0.0
    %451 = vmatpush1.msra.mxu0 %v442
    %452 = vmatprep.subr.mxu0 0.0
    %453 = vmatpush1.msra.mxu0 %v443
    %454 = vmatprep.subr.mxu0 0.0
    %455 = vmatpush1.msra.mxu0 %v444
    %456 = vmatprep.subr.mxu0 0.0
    %457 = vmatpush1.msra.mxu0 0.0
    %458 = vmatprep.subr.mxu0 0.0
    %459 = vmatpush1.msra.mxu0 0.0
    %460 = vmatprep.subr.mxu0 0.0
    %461 = vmatpush1.msra.mxu0 0.0
    %462 = vmatprep.subr.mxu0 0.0
    %463 = vmatpush1.msra.mxu0 0.0
    %464 = vmatprep.subr.mxu0 0.0
    %465 = vmatpush1.msra.mxu0 0.0
    %466 = vmatprep.subr.mxu0 0.0
    %467 = vmatpush1.msra.mxu0 0.0
    %468 = vmatprep.subr.mxu0 0.0
    %469 = vmatpush1.msra.mxu0 0.0
    %470 = vmatprep.subr.mxu0 0.0
    %471 = vmatpush1.msra.mxu0 0.0
    %472 = vmatprep.subr.mxu0 0.0
    %473 = vmatpush1.msra.mxu0 0.0
    %474 = vmatprep.subr.mxu0 0.0
    %475 = vmatpush1.msra.mxu0 0.0
    %476 = vmatprep.subr.mxu0 0.0
    %477 = vmatpush1.msra.mxu0 0.0
    %478 = vmatprep.subr.mxu0 0.0
    %479 = vmatpush1.msra.mxu0 0.0
    %480 = vmatprep.subr.mxu0 0.0
    %481 = vmatpush1.msra.mxu0 0.0
    %482 = vmatprep.subr.mxu0 0.0
    %483 = vmatpush1.msra.mxu0 0.0
    %484 = vmatprep.subr.mxu0 0.0
    %485 = vmatpush1.msra.mxu0 0.0
    %486 = vmatprep.subr.mxu0 0.0
    %487 = vmatpush1.msra.mxu0 0.0
    %488 = vmatprep.subr.mxu0 0.0
    %489 = vmatpush1.msra.mxu0 0.0
    %490 = vmatprep.subr.mxu0 0.0
    %491 = vmatpush1.msra.mxu0 0.0
    %492 = vmatprep.subr.mxu0 0.0
    %493 = vmatpush1.msra.mxu0 0.0
    %494 = vmatprep.subr.mxu0 0.0
    %495 = vmatpush1.msra.mxu0 0.0
    %496 = vmatprep.subr.mxu0 0.0
    %497 = vmatpush1.msra.mxu0 0.0
    %498 = vmatprep.subr.mxu0 0.0
    %499 = vmatpush1.msra.mxu0 0.0
    %500 = vmatprep.subr.mxu0 0.0
    %501 = vmatpush1.msra.mxu0 0.0
    %502 = vmatprep.subr.mxu0 0.0
    %503 = vmatpush1.msra.mxu0 0.0
    %504 = vmatprep.subr.mxu0 0.0
    %505 = vmatpush1.msra.mxu0 0.0
    %506 = vmatprep.subr.mxu0 0.0
    %507 = vmatpush1.msra.mxu0 0.0
    %508 = vmatprep.subr.mxu0 0.0
    %509 = vmatpush1.msra.mxu0 0.0
    %510 = vmatprep.subr.mxu0 0.0
    %511 = vmatpush1.msra.mxu0 0.0
    %512 = vmatprep.mubr.f32.mxu0 0.0
    %513 = vmatmul.mubr.f32.gmra.mrb[0].mxu0 %v446
    %v514 = vpop.f32.mrb[0].mxu0
    %v515 = vadd.f32 0.0, %v514
    %v516 = vpop.f32.mrb[0].mxu0
    %517 = vdwg.mxu0
    %vm518 = vcmask 60416
    %v519 = vsel %vm518, %v515, -inf
    %520 = vmax.xlane.f32.xlu0 %v519
    %v521 = vpop.xlane.xlu0 %520
    %v522 = vsub.f32 %v515, %v521
    %v523 = vmul.f32 %v522, 1.442695
    %v524 = vpow.pop %v523
    %v525 = vsel %vm518, %v524, 0.0
    %526 = vadd.xlane.f32.xlu0 %v525
    %v527 = vpop.xlane.xlu0 %526
    %v528 = vlog2.pop %v527
    %v529 = vmul.f32 %v528, 0.6931472
    %v530 = vsub.f32 %v522, %v529
    %531 = vst.msk [vmem:[#allocation2] sm:$0xf] %vm518, %v530
    // Predicated region
    $region26: #{attn_bahd_forward.1} parent=1 // pred_check
      _
    $region27: #{attn_bahd_forward.1} parent=1 // pred_check_branch
      %533 = sbr.rel (0) target = $region29
    $region28: #{attn_bahd_forward.1} parent=1 // pred_region
      %s535 = ssub.s32 64, 64
      %536 = vsyncadd [#allocation3], %s535
      %s538 = sshll.u32 [#allocation2], 4
      %s539 = int_to_ptr.vmem [resolvable:$true] %s538
      %541 = dma.vmem_to_hbm [thread:$0]  %s539, 64, %s6, [#allocation3]
    $region29: #{attn_bahd_forward.1} parent=1 // pred_fallthru
      _
    // Predicated region
    $region30: #{attn_bahd_forward.1} parent=1 // pred_check
      _
    $region31: #{attn_bahd_forward.1} parent=1 // pred_check_branch
      %543 = sbr.rel (0) target = $region33
    $region32: #{attn_bahd_forward.1} parent=1 // pred_region
      %544 = dma.done [#allocation3], 64
    $region33: #{attn_bahd_forward.1} parent=1 // pred_fallthru
      _
    %545 = vsyncpa [#allocation3], 1

</llo_original>
